<compile_context>
chip_gen: v6e
topology: v6e:2x2x1
jax: 0.10.0
libtpu: 0.0.40
codegen_flags: <defaults>
</compile_context>

<pallas_src>
import functools

import jax
import jax.numpy as jnp
from jax.experimental import pallas as pl
from jax.experimental.pallas import tpu as pltpu

LANES = 128


def _generation_defaults():
    """(default f32 tile_rows, preferred parallel chunks) per TPU generation.

    Uses the stable device_kind string; falls back to conservative values if
    the query fails (e.g. tracing without devices).
    """
    kind = ""
    try:
        kind = jax.devices()[0].device_kind.lower()
    except Exception:  # pragma: no cover - defensive
        pass
    if "v7" in kind or "tpu7" in kind:
        # 2 TensorCores/chip, ~3.2 TB/s HBM, 64 MiB VMEM (32 MiB scoped default):
        # 4 MiB blocks (16 MiB double-buffered for 2 inputs) and one chunk per TC.
        return 8192, 2
    if "v6" in kind:
        # 1 TC, 1.4 TB/s, 32 MiB scoped default: 4 MiB blocks, no chunk split.
        return 8192, 1
    # v5e (16 MiB scoped default) and unknown chips: 2 MiB blocks, no split.
    return 4096, 1


def _l1_partial_kernel(pred_ref, target_ref, out_ref, *, rows_valid):
    c = pl.program_id(0)   # parallel chunk (maps to a TensorCore on v7x)
    i = pl.program_id(1)   # sequential row-tile within the chunk

    # Output block index depends only on c -> resident across the i axis.
    @pl.when(i == 0)
    def _():
        out_ref[...] = jnp.zeros_like(out_ref)

    # Cast before subtract so bf16 inputs lose no precision in the difference.
    a = pred_ref[...].astype(jnp.float32)
    b = target_ref[...].astype(jnp.float32)
    diff = jnp.abs(a - b)

    tile_rows = diff.shape[0]
    logical_tile = c * pl.num_programs(1) + i
    # Fully-valid interior tile: mask-free hot path (pure sub/abs/add on VPU).
    is_full = (logical_tile + 1) * tile_rows <= rows_valid

    @pl.when(is_full)
    def _():
        out_ref[...] += diff.reshape(-1, 8, LANES).sum(axis=0)

    # Cold path: ragged last tile, Pallas-padded partial block, or the clamped
    # duplicate block from an uneven chunk split -> mask rows past the data end.
    @pl.when(jnp.logical_not(is_full))
    def _():
        row_ids = logical_tile * tile_rows + jax.lax.broadcasted_iota(
            jnp.int32, diff.shape, 0)
        masked = jnp.where(row_ids < rows_valid, diff, 0.0)
        out_ref[...] += masked.reshape(-1, 8, LANES).sum(axis=0)


@functools.partial(jax.jit, static_argnames=("tile_rows",))
def content_loss(pred, target, *, tile_rows=None):
    """L1 loss (mean absolute error) between pred and target, any matching shape.

    tile_rows=None picks a generation-tuned default (8192 f32 rows on v6e/v7x,
    4096 on v5e); pass an explicit value to override.
    """
    assert pred.shape == target.shape, "pred/target shape mismatch"
    n_elem = pred.size
    assert n_elem > 0, "L1 loss of empty tensors is undefined"

    pred_f = pred.reshape(-1)
    target_f = target.reshape(-1)

    itemsize = pred.dtype.itemsize
    sub = max(8, 32 // max(1, itemsize))          # 8 f32, 16 bf16, 32 int8/fp8
    default_rows, num_chunks_pref = _generation_defaults()
    if tile_rows is None:
        # Keep the DMA block size in *bytes* constant across dtypes.
        tile_rows = default_rows * max(1, 4 // itemsize)
    tile_rows = max(sub, (int(tile_rows) // sub) * sub)

    rows = n_elem // LANES
    tail = n_elem - rows * LANES

    # Tail (<128 elements) handled in plain XLA instead of padding full copies
    # of both inputs in HBM.
    if tail:
        pt = pred_f[rows * LANES:].astype(jnp.float32)
        tt = target_f[rows * LANES:].astype(jnp.float32)
        tail_sum = jnp.sum(jnp.abs(pt - tt))
    else:
        tail_sum = jnp.float32(0.0)

    if rows == 0:
        # Entire input is smaller than one 128-lane row; a kernel has no win here.
        return (tail_sum / jnp.float32(n_elem)).astype(jnp.float32)

    main = rows * LANES
    pred2d = (pred_f[:main] if tail else pred_f).reshape(rows, LANES)
    target2d = (target_f[:main] if tail else target_f).reshape(rows, LANES)

    rows_up = ((rows + sub - 1) // sub) * sub
    tile_rows = min(tile_rows, rows_up)

    num_tiles = pl.cdiv(rows, tile_rows)
    # Split across TensorCores only where there are 2 of them (v7x).
    num_chunks = num_chunks_pref if num_tiles >= num_chunks_pref else 1
    steps = pl.cdiv(num_tiles, num_chunks)
    last_tile = num_tiles - 1

    if num_chunks == 1:
        in_map = lambda c, i: (i, 0)
    elif num_tiles % num_chunks == 0:
        in_map = lambda c, i: (c * steps + i, 0)
    else:
        # Uneven split: clamp so we never index past the array; the kernel's
        # row mask zeroes the duplicated (clamped) block.
        in_map = lambda c, i: (jnp.minimum(c * steps + i, last_tile), 0)

    kernel = functools.partial(_l1_partial_kernel, rows_valid=rows)

    cost = pl.CostEstimate(
        flops=3 * rows * LANES,
        transcendentals=0,
        bytes_accessed=2 * rows * LANES * itemsize + num_chunks * 8 * LANES * 4,
    )

    partials = pl.pallas_call(
        kernel,
        out_shape=jax.ShapeDtypeStruct((num_chunks * 8, LANES), jnp.float32),
        grid_spec=pltpu.PrefetchScalarGridSpec(
            num_scalar_prefetch=0,
            grid=(num_chunks, steps),
            in_specs=[
                pl.BlockSpec((tile_rows, LANES), in_map),
                pl.BlockSpec((tile_rows, LANES), in_map),
            ],
            out_specs=pl.BlockSpec((8, LANES), lambda c, i: (c, 0)),
        ),
        compiler_params=pltpu.CompilerParams(
            dimension_semantics=("parallel", "arbitrary"),
        ),
        cost_estimate=cost,
    )(pred2d, target2d)

    total = jnp.sum(partials) + tail_sum   # tiny (chunks*8, 128) reduce in XLA
    return (total / jnp.float32(n_elem)).astype(jnp.float32)


if __name__ == "__main__":
    key = jax.random.PRNGKey(0)
    k1, k2, k3, k4 = jax.random.split(key, 4)

    # NCHW, consistent with typical conv feature maps fed to ContentLoss.
    pred = jax.random.normal(k1, (2, 4, 16, 16), dtype=jnp.float32)
    target = jax.random.normal(k2, (2, 4, 16, 16), dtype=jnp.float32)

    loss = content_loss(pred, target)
    jax.block_until_ready(loss)
    ref = jnp.mean(jnp.abs(pred - target))
    assert jnp.allclose(loss, ref, rtol=1e-5, atol=1e-6), (loss, ref)

    # Exercise the multi-tile accumulation path (and, on v7x, the 2-chunk split
    # with an odd tile count / masked duplicate block): 3072 elems -> 24 rows
    # -> 3 tiles of 8 rows.
    p2 = jax.random.normal(k3, (3, 1, 32, 32), dtype=jnp.float32)
    t2 = jax.random.normal(k4, (3, 1, 32, 32), dtype=jnp.float32)
    loss2 = content_loss(p2, t2, tile_rows=8)
    ref2 = jnp.mean(jnp.abs(p2 - t2))
    assert jnp.allclose(loss2, ref2, rtol=1e-5, atol=1e-6), (loss2, ref2)

    # Ragged (non-multiple-of-128) path: 210 elements -> 1 full row + 82 tail
    # summed in XLA (no full-array pad copy).
    p3 = jax.random.normal(k3, (2, 3, 7, 5), dtype=jnp.float32)
    t3 = jax.random.normal(k4, (2, 3, 7, 5), dtype=jnp.float32)
    loss3 = content_loss(p3, t3)
    ref3 = jnp.mean(jnp.abs(p3 - t3))
    assert jnp.allclose(loss3, ref3, rtol=1e-5, atol=1e-6), (loss3, ref3)

    # bf16 path: cast-before-subtract inside the kernel, (16,128) min tile.
    p4 = jax.random.normal(k1, (2, 4, 16, 16), dtype=jnp.bfloat16)
    t4 = jax.random.normal(k2, (2, 4, 16, 16), dtype=jnp.bfloat16)
    loss4 = content_loss(p4, t4)
    ref4 = jnp.mean(jnp.abs(p4.astype(jnp.float32) - t4.astype(jnp.float32)))
    assert jnp.allclose(loss4, ref4, rtol=1e-5, atol=1e-6), (loss4, ref4)

    print("KERNEL_OK")
</pallas_src>

<mosaic_0001>
module attributes {stable_mosaic.version = 11 : i64} {
  func.func @_l1_partial_kernel(%arg0: i32, %arg1: i32, %arg2: memref<16x128xf32, #tpu.memory_space<vmem>>, %arg3: memref<16x128xf32, #tpu.memory_space<vmem>>, %arg4: memref<8x128xf32, #tpu.memory_space<vmem>>) attributes {dimension_semantics = [#tpu.dimension_semantics<parallel>, #tpu.dimension_semantics<arbitrary>], iteration_bounds = array<i64: 1, 1>, scalar_prefetch = 0 : i64, scratch_operands = 0 : i64, tpu.core_type = #tpu.core_type<tc>, window_params = [{transform_indices = @transform_0, window_bounds = array<i64: 16, 128>}, {transform_indices = @transform_1, window_bounds = array<i64: 16, 128>}, {transform_indices = @transform_2, window_bounds = array<i64: 8, 128>}]} {
    %c0_i32 = arith.constant 0 : i32
    %0 = arith.cmpi eq, %arg1, %c0_i32 : i32
    %1 = arith.extui %0 : i1 to i32
    %c0_i32_0 = arith.constant 0 : i32
    %2 = arith.cmpi ne, %1, %c0_i32_0 : i32
    scf.if %2 {
      %cst = arith.constant 0.000000e+00 : f32
      %17 = vector.broadcast %cst : f32 to vector<8x128xf32>
      %c0_8 = arith.constant 0 : index
      %c0_9 = arith.constant 0 : index
      %18 = vector.load %arg4[%c0_8, %c0_9] : memref<8x128xf32, #tpu.memory_space<vmem>>, vector<8x128xf32>
      tpu.vector_store %arg4[%c0_8, %c0_9], %17 {strides = array<i32>} : memref<8x128xf32, #tpu.memory_space<vmem>>, vector<8x128xf32>,
    } else {
    }
    %c0 = arith.constant 0 : index
    %c0_1 = arith.constant 0 : index
    %3 = vector.load %arg2[%c0, %c0_1] : memref<16x128xf32, #tpu.memory_space<vmem>>, vector<16x128xf32>
    %c0_2 = arith.constant 0 : index
    %c0_3 = arith.constant 0 : index
    %4 = vector.load %arg3[%c0_2, %c0_3] : memref<16x128xf32, #tpu.memory_space<vmem>>, vector<16x128xf32>
    %5 = arith.subf %3, %4 : vector<16x128xf32>
    %6 = math.absf %5 : vector<16x128xf32>
    %c1_i32 = arith.constant 1 : i32
    %7 = arith.muli %arg0, %c1_i32 : i32
    %8 = arith.addi %7, %arg1 : i32
    %c1_i32_4 = arith.constant 1 : i32
    %9 = arith.addi %8, %c1_i32_4 : i32
    %c16_i32 = arith.constant 16 : i32
    %10 = arith.muli %9, %c16_i32 : i32
    %c16_i32_5 = arith.constant 16 : i32
    %11 = arith.cmpi sle, %10, %c16_i32_5 : i32
    %12 = arith.extui %11 : i1 to i32
    %c0_i32_6 = arith.constant 0 : i32
    %13 = arith.cmpi ne, %12, %c0_i32_6 : i32
    scf.if %13 {
      %c0_8 = arith.constant 0 : index
      %c0_9 = arith.constant 0 : index
      %17 = vector.load %arg4[%c0_8, %c0_9] : memref<8x128xf32, #tpu.memory_space<vmem>>, vector<8x128xf32>
      %18 = vector.shape_cast %6 : vector<16x128xf32> to vector<2x8x128xf32>
      %cst = arith.constant dense<0.000000e+00> : vector<8x128xf32>
      %19 = vector.multi_reduction <add>, %18, %cst [0] : vector<2x8x128xf32> to vector<8x128xf32>
      %20 = arith.addf %17, %19 : vector<8x128xf32>
      %c0_10 = arith.constant 0 : index
      %c0_11 = arith.constant 0 : index
      %21 = vector.load %arg4[%c0_10, %c0_11] : memref<8x128xf32, #tpu.memory_space<vmem>>, vector<8x128xf32>
      tpu.vector_store %arg4[%c0_10, %c0_11], %20 {strides = array<i32>} : memref<8x128xf32, #tpu.memory_space<vmem>>, vector<8x128xf32>,
    } else {
    }
    %true = arith.constant true
    %14 = arith.xori %11, %true : i1
    %15 = arith.extui %14 : i1 to i32
    %c0_i32_7 = arith.constant 0 : i32
    %16 = arith.cmpi ne, %15, %c0_i32_7 : i32
    scf.if %16 {
      %c16_i32_8 = arith.constant 16 : i32
      %17 = arith.muli %8, %c16_i32_8 : i32
      %18 = tpu.iota {dimensions = array<i32: 0>} : vector<16x128xi32>
      %19 = vector.broadcast %17 : i32 to vector<16x128xi32>
      %20 = arith.addi %19, %18 : vector<16x128xi32>
      %c16_i32_9 = arith.constant 16 : i32
      %21 = vector.broadcast %c16_i32_9 : i32 to vector<16x128xi32>
      %22 = arith.cmpi slt, %20, %21 : vector<16x128xi32>
      %cst = arith.constant 0.000000e+00 : f32
      %23 = vector.broadcast %cst : f32 to vector<16x128xf32>
      %24 = arith.select %22, %6, %23 : vector<16x128xi1>, vector<16x128xf32>
      %c0_10 = arith.constant 0 : index
      %c0_11 = arith.constant 0 : index
      %25 = vector.load %arg4[%c0_10, %c0_11] : memref<8x128xf32, #tpu.memory_space<vmem>>, vector<8x128xf32>
      %26 = vector.shape_cast %24 : vector<16x128xf32> to vector<2x8x128xf32>
      %cst_12 = arith.constant dense<0.000000e+00> : vector<8x128xf32>
      %27 = vector.multi_reduction <add>, %26, %cst_12 [0] : vector<2x8x128xf32> to vector<8x128xf32>
      %28 = arith.addf %25, %27 : vector<8x128xf32>
      %c0_13 = arith.constant 0 : index
      %c0_14 = arith.constant 0 : index
      %29 = vector.load %arg4[%c0_13, %c0_14] : memref<8x128xf32, #tpu.memory_space<vmem>>, vector<8x128xf32>
      tpu.vector_store %arg4[%c0_13, %c0_14], %28 {strides = array<i32>} : memref<8x128xf32, #tpu.memory_space<vmem>>, vector<8x128xf32>,
    } else {
    }
    return
  }
  func.func @transform_0(%arg0: i32, %arg1: i32) -> (i32, i32) {
    %c0_i32 = arith.constant 0 : i32
    %c0_i32_0 = arith.constant 0 : i32
    return %arg1, %c0_i32 : i32, i32
  }
  func.func @transform_1(%arg0: i32, %arg1: i32) -> (i32, i32) {
    %c0_i32 = arith.constant 0 : i32
    %c0_i32_0 = arith.constant 0 : i32
    return %arg1, %c0_i32 : i32, i32
  }
  func.func @transform_2(%arg0: i32, %arg1: i32) -> (i32, i32) {
    %c0_i32 = arith.constant 0 : i32
    %c0_i32_0 = arith.constant 0 : i32
    return %arg0, %c0_i32 : i32, i32
  }
}

</mosaic_0001>

<llo_original>
// kernel: content_loss.1
$region0: #{content_loss.1}
  #allocation0 [shape = 'u32[]', space=smem, size = 0x4, offset = 0x4, fixed_abs, tag = 'smem constant byte address 0x4 - core index']
  #allocation1 [shape = 'u32[144,128]{1,0:T(1,128)}', space=vmem, size = 0x12000, scoped, tag = 'internal scratch']
  %s0 = inlined_call_operand.vmem [shape: f32[16,128], index: 0, kind: input, shape index: {}]
  %s1 = inlined_call_operand.vmem [shape: f32[16,128], index: 1, kind: input, shape index: {}]
  %s2 = inlined_call_operand.vmem [shape: f32[8,128], index: 2, kind: output, shape index: {}]
  %s3 = sld [smem:[#allocation0]]
  $region30: #{content_loss.1} parent=0
    _
  %s5 = ssub.s32 1, %s3
  %s6 = scalar_select 0, %s5, %s3
  // Predicated region
  $region2: #{content_loss.1} parent=0 // pred_check
    _
  $region3: #{content_loss.1} parent=0 // pred_check_branch
    %8 = sbr.rel (0) target = $region5
  $region4: #{content_loss.1} parent=0 // pred_region
    _
  $region5: #{content_loss.1} parent=0 // pred_fallthru
    _
  // Predicated region
  $region6: #{content_loss.1} parent=0 // pred_check
    _
  $region7: #{content_loss.1} parent=0 // pred_check_branch
    %10 = sbr.rel (0) target = $region9
  $region8: #{content_loss.1} parent=0 // pred_region
    _
  $region9: #{content_loss.1} parent=0 // pred_fallthru
    _
  %p11 = scmp.eq.s32.totalorder 0, 0
  // Predicated region
  $region10: #{content_loss.1} parent=0 // pred_check
    %p12 = pneg %p11
  $region11: #{content_loss.1} parent=0 // pred_check_branch
    %14 = sbr.rel (%p12) target = $region13
  $region12: #{content_loss.1} parent=0 // pred_region
    %15 = vst [vmem:[%s2] sm:$0xff] 0.0
  $region13: #{content_loss.1} parent=0 // pred_fallthru
    _
  %v16 = vld [vmem:[%s0] sm:$0xff]
  %v17 = vld [vmem:[%s0 + $0x8] sm:$0xff]
  %v18 = vld [vmem:[%s1] sm:$0xff]
  %v19 = vld [vmem:[%s1 + $0x8] sm:$0xff]
  %v20 = vsub.f32 %v16, %v18
  %v21 = vsub.f32 %v17, %v19
  %v22 = vand.u32 2147483647, %v20
  %v23 = vand.u32 2147483647, %v21
  %s24 = sadd.s32 0, 0
  %s25 = sadd.s32 %s24, 1
  %s26 = smul.u32 %s25, 16
  %p27 = scmp.le.s32.totalorder %s26, 16
  // Predicated region
  $region14: #{content_loss.1} parent=0 // pred_check
    %p28 = pneg %p27
  $region15: #{content_loss.1} parent=0 // pred_check_branch
    %30 = sbr.rel (%p28) target = $region17
  $region16: #{content_loss.1} parent=0 // pred_region
    %v31 = vld [vmem:[%s2] sm:$0xff]
    %v32 = vadd.f32 %v22, %v23
    %v33 = vadd.f32 %v31, %v32
    %34 = vst [vmem:[%s2] sm:$0xff] %v33
  $region17: #{content_loss.1} parent=0 // pred_fallthru
    _
  %p35 = scmp.gt.s32.totalorder %s26, 16
  // Predicated region
  $region18: #{content_loss.1} parent=0 // pred_check
    %p36 = pneg %p35
  $region19: #{content_loss.1} parent=0 // pred_check_branch
    %38 = sbr.rel (%p36) target = $region21
  $region20: #{content_loss.1} parent=0 // pred_region
    %s39 = smul.u32 %s24, 16
    %v40 = vlaneseq
    %v41 = vshrl.u32 %v40, 7
    %v42 = vadd.s32 %v41, 8
    %v43 = vstv %s39
    %v44 = vadd.s32 %v43, %v41
    %v45 = vadd.s32 %v43, %v42
    %vm46 = vcmp.lt.s32.totalorder %v44, 16
    %vm47 = vcmp.lt.s32.totalorder %v45, 16
    %v48 = vsel %vm46, %v22, 0.0
    %v49 = vsel %vm47, %v23, 0.0
    %v50 = vld [vmem:[%s2] sm:$0xff]
    %v51 = vadd.f32 %v48, %v49
    %v52 = vadd.f32 %v50, %v51
    %53 = vst [vmem:[%s2] sm:$0xff] %v52
  $region21: #{content_loss.1} parent=0 // pred_fallthru
    _
  // Predicated region
  $region22: #{content_loss.1} parent=0 // pred_check
    _
  $region23: #{content_loss.1} parent=0 // pred_check_branch
    %55 = sbr.rel (0) target = $region25
  $region24: #{content_loss.1} parent=0 // pred_region
    _
  $region25: #{content_loss.1} parent=0 // pred_fallthru
    _
  // Predicated region
  $region26: #{content_loss.1} parent=0 // pred_check
    _
  $region27: #{content_loss.1} parent=0 // pred_check_branch
    %57 = sbr.rel (0) target = $region29
  $region28: #{content_loss.1} parent=0 // pred_region
    _
  $region29: #{content_loss.1} parent=0 // pred_fallthru
    _

</llo_original>
